<compile_context>
chip_gen: v7x
topology: tpu7x:2x2x1
jax: 0.10.0
libtpu: 0.0.40
codegen_flags: <defaults>
</compile_context>

<pallas_src>
import math
import functools

import jax
import jax.numpy as jnp
from jax import lax
from jax.experimental import pallas as pl
from jax.experimental.pallas import tpu as pltpu


# ----------------------------- Generation-aware VMEM budget -----------------------------

def _vmem_limit_bytes():
    """Scoped-VMEM request: ~64 MiB on 128 MiB parts (v5e/v6e), ~44 MiB on 64 MiB parts (v7x)."""
    default = 48 * 1024 * 1024
    try:
        info = pltpu.get_tpu_info()
        cap = None
        for name in ("vmem_capacity_bytes", "vmem_size_bytes", "vmem_bytes"):
            cap = getattr(info, name, None)
            if cap:
                break
        if not cap:
            return default
        cap = int(cap)
    except Exception:
        return default
    if cap <= 64 * 1024 * 1024:
        return 44 * 1024 * 1024          # v7x-class: leave headroom for compiler scratch
    return 64 * 1024 * 1024              # v5e/v6e: 128 MiB physical


VMEM_LIMIT_BYTES = _vmem_limit_bytes()


# ----------------------------- Tile-size helpers -----------------------------

def _divisor_tiles(dim, candidates):
    """Candidates (descending) that exactly divide dim; fall back to the full extent."""
    c = [x for x in candidates if x <= dim and dim % x == 0]
    return c if c else [dim]


def _pick_tile(dim, candidates):
    return _divisor_tiles(dim, candidates)[0]


def _attn_t_tile_weights(t, s, e, h, item):
    """t_tile for the need_weights=True kernel, sized so the H*t_tile*S weights block fits."""
    cands = _divisor_tiles(t, (512, 256, 128, 64, 32, 16))
    for t_tile in cands:
        need = (2 * t_tile * e * item          # q block (double-buffered)
                + 2 * 2 * s * e * item         # k + v full-S blocks
                + 2 * t_tile * e * item        # output block
                + 2 * h * t_tile * s * 4       # attention-weights block (fp32)
                + t_tile * e * 4               # acc scratch
                + h * t_tile * s * 4)          # headroom for score/exp intermediates
        if need <= int(VMEM_LIMIT_BYTES * 0.9):
            return t_tile
    return cands[-1]


def _attn_tiles_flash(t, s, e, h, item):
    """(t_tile, s_tile) for the flash (no-weights) kernel within the VMEM budget."""
    t_cands = _divisor_tiles(t, (512, 256, 128, 64, 32, 16))
    s_cands = _divisor_tiles(s, (1024, 512, 256, 128))
    for t_tile in t_cands:
        for s_tile in s_cands:
            need = (2 * t_tile * e * item          # q block
                    + 2 * 2 * s_tile * e * item    # k + v S-tiles
                    + 2 * t_tile * e * item        # output block
                    + t_tile * e * 4               # acc scratch
                    + 2 * h * t_tile * 128 * 4     # m/l scratch (lane padded)
                    + 2 * t_tile * s_tile * 4)     # headroom for score/exp tiles
            if need <= int(VMEM_LIMIT_BYTES * 0.8):
                return t_tile, s_tile
    return t_cands[-1], s_cands[-1]


# ----------------------------- Tiled linear (GEMM) kernel ------------------------------

def _linear_kernel(x_ref, wt_ref, b_ref, o_ref, acc_ref):
    # x: (tm, tk), wt: (tk, tn) (pre-transposed weight, compute dtype), b: (1, tn) fp32.
    @pl.when(pl.program_id(2) == 0)
    def _():
        acc_ref[...] = jnp.zeros_like(acc_ref)

    # Cast the activation tile to the (bf16) weight dtype -> bf16 MXU, fp32 accumulation.
    acc_ref[...] += jnp.dot(x_ref[...].astype(wt_ref.dtype), wt_ref[...],
                            preferred_element_type=jnp.float32)

    @pl.when(pl.program_id(2) == pl.num_programs(2) - 1)
    def _():
        o_ref[...] = (acc_ref[...] + b_ref[...]).astype(o_ref.dtype)


def pallas_linear(x, wt, b, out_dtype=None):
    """y = x @ wt + b  (wt is the already-transposed nn.Linear weight, stored in compute dtype).

    x: (N, Din), wt: (Din, Dout), b: (Dout,) fp32 -> (N, Dout) in out_dtype.
    """
    n, din = x.shape
    dout = wt.shape[1]
    out_dtype = out_dtype or x.dtype

    # Larger tiles than before: max working set with (1024, 512, 512) fp32 stays well under the
    # scoped-VMEM budget (~12 MiB double-buffered), so no VMEM-driven shrink is needed here.
    tm = _pick_tile(n, (1024, 512, 256, 128, 64, 32, 16))
    tk = _pick_tile(din, (512, 256, 128))
    tn = _pick_tile(dout, (512, 256, 128))

    grid = (n // tm, dout // tn, din // tk)
    b2 = b.reshape(1, dout).astype(jnp.float32)

    return pl.pallas_call(
        _linear_kernel,
        out_shape=jax.ShapeDtypeStruct((n, dout), out_dtype),
        grid_spec=pltpu.PrefetchScalarGridSpec(
            num_scalar_prefetch=0,
            grid=grid,
            in_specs=[
                pl.BlockSpec((tm, tk), lambda i, j, k: (i, k)),
                pl.BlockSpec((tk, tn), lambda i, j, k: (k, j)),
                pl.BlockSpec((1, tn), lambda i, j, k: (0, j)),
            ],
            out_specs=pl.BlockSpec((tm, tn), lambda i, j, k: (i, j)),
            scratch_shapes=[pltpu.VMEM((tm, tn), jnp.float32)],
        ),
        compiler_params=pltpu.CompilerParams(
            dimension_semantics=("parallel", "parallel", "arbitrary"),
            vmem_limit_bytes=VMEM_LIMIT_BYTES,
        ),
    )(x, wt, b2)


# ----------------------------- Attention kernels ------------------------------
# Note: the 1/sqrt(d_k) scale is already folded into the Q projection weights, so the kernels
# compute plain softmax(Q K^T) V per head.

def _mha_weights_kernel(q_ref, k_ref, v_ref, o_ref, w_ref, acc_sc, *, num_heads):
    # q_ref: (1, t_tile, E), k_ref/v_ref: (1, S, E), o_ref: (1, t_tile, E),
    # w_ref: (H, 1, t_tile, S) fp32 (user-visible), acc_sc: (t_tile, E) fp32 scratch.
    q = q_ref[0]
    k = k_ref[0]
    v = v_ref[0]
    e = q.shape[-1]
    d = e // num_heads

    for h in range(num_heads):                 # static unroll; each head is 2-D MXU work
        lo = h * d
        sc = lax.dot_general(q[:, lo:lo + d], k[:, lo:lo + d],
                             (((1,), (1,)), ((), ())),
                             preferred_element_type=jnp.float32)          # (t_tile, S)
        sc = sc - jnp.max(sc, axis=-1, keepdims=True)
        ex = jnp.exp(sc)
        # Exact reciprocal: attention weights are a user-visible output.
        p = ex * pl.reciprocal(jnp.sum(ex, axis=-1, keepdims=True), approx=False)
        w_ref[h, 0] = p.astype(w_ref.dtype)
        acc_sc[:, lo:lo + d] = jnp.dot(p.astype(v.dtype), v[:, lo:lo + d],
                                       preferred_element_type=jnp.float32)

    # Single lane-dense (t_tile, E) store (no per-head narrow stores, no concatenate relayout).
    o_ref[0] = acc_sc[...].astype(o_ref.dtype)


def _mha_flash_kernel(q_ref, k_ref, v_ref, o_ref, m_sc, l_sc, acc_sc, *, num_heads):
    # Online-softmax over the S grid axis.  q_ref: (1, t_tile, E), k_ref/v_ref: (1, s_tile, E),
    # o_ref: (1, t_tile, E).  Scratch: m/l (H, t_tile, 1) fp32, acc (t_tile, E) fp32.
    si = pl.program_id(2)

    @pl.when(si == 0)
    def _():
        m_sc[...] = jnp.full(m_sc.shape, -jnp.inf, dtype=m_sc.dtype)
        l_sc[...] = jnp.zeros(l_sc.shape, dtype=l_sc.dtype)
        acc_sc[...] = jnp.zeros(acc_sc.shape, dtype=acc_sc.dtype)

    q = q_ref[0]
    k = k_ref[0]
    v = v_ref[0]
    e = q.shape[-1]
    d = e // num_heads

    for h in range(num_heads):
        lo = h * d
        sc = lax.dot_general(q[:, lo:lo + d], k[:, lo:lo + d],
                             (((1,), (1,)), ((), ())),
                             preferred_element_type=jnp.float32)          # (t_tile, s_tile)
        m_prev = m_sc[h]                                                   # (t_tile, 1)
        m_new = jnp.maximum(m_prev, jnp.max(sc, axis=-1, keepdims=True))
        alpha = jnp.exp(m_prev - m_new)
        p = jnp.exp(sc - m_new)
        l_sc[h] = alpha * l_sc[h] + jnp.sum(p, axis=-1, keepdims=True)
        acc_sc[:, lo:lo + d] = (alpha * acc_sc[:, lo:lo + d]
                                + jnp.dot(p.astype(v.dtype), v[:, lo:lo + d],
                                          preferred_element_type=jnp.float32))
        m_sc[h] = m_new

    @pl.when(si == pl.num_programs(2) - 1)
    def _():
        for h in range(num_heads):
            lo = h * d
            # Exact reciprocal on the user-visible normalization.
            acc_sc[:, lo:lo + d] = acc_sc[:, lo:lo + d] * pl.reciprocal(l_sc[h], approx=False)
        o_ref[0] = acc_sc[...].astype(o_ref.dtype)


def pallas_attention(q_arr, k_arr, v_arr, embed_dim, col_offs, num_heads, need_weights):
    """Batch-major attention over all heads at once.

    q_arr: (B, T, Cq), k_arr/v_arr: (B, S, Ck) where C* is E or 3E (fused slab).
    col_offs: block indices (in units of E) selecting the q/k/v columns inside each array.
    Returns (attn (B, T, E), weights (H, B, T, S) fp32 or None).
    """
    b, t, _ = q_arr.shape
    s = k_arr.shape[1]
    e = embed_dim
    item = jnp.dtype(q_arr.dtype).itemsize
    qo, ko, vo = col_offs

    if need_weights:
        t_tile = _attn_t_tile_weights(t, s, e, num_heads, item)
        grid = (b, t // t_tile)
        kernel = functools.partial(_mha_weights_kernel, num_heads=num_heads)
        out_shape = (
            jax.ShapeDtypeStruct((b, t, e), q_arr.dtype),
            jax.ShapeDtypeStruct((num_heads, b, t, s), jnp.float32),
        )
        in_specs = [
            pl.BlockSpec((1, t_tile, e), lambda bi, ti: (bi, ti, qo)),
            pl.BlockSpec((1, s, e), lambda bi, ti: (bi, 0, ko)),
            pl.BlockSpec((1, s, e), lambda bi, ti: (bi, 0, vo)),
        ]
        out_specs = (
            pl.BlockSpec((1, t_tile, e), lambda bi, ti: (bi, ti, 0)),
            pl.BlockSpec((num_heads, 1, t_tile, s), lambda bi, ti: (0, bi, ti, 0)),
        )
        res = pl.pallas_call(
            kernel,
            out_shape=out_shape,
            grid_spec=pltpu.PrefetchScalarGridSpec(
                num_scalar_prefetch=0, grid=grid,
                in_specs=in_specs, out_specs=out_specs,
                scratch_shapes=[pltpu.VMEM((t_tile, e), jnp.float32)]),
            compiler_params=pltpu.CompilerParams(
                dimension_semantics=("parallel", "parallel"),
                vmem_limit_bytes=VMEM_LIMIT_BYTES),
        )(q_arr, k_arr, v_arr)
        return res[0], res[1]

    # need_weights=False: flash-style online-softmax, S-tiled, no O(H*B*T*S) writeback.
    t_tile, s_tile = _attn_tiles_flash(t, s, e, num_heads, item)
    grid = (b, t // t_tile, s // s_tile)
    kernel = functools.partial(_mha_flash_kernel, num_heads=num_heads)
    res = pl.pallas_call(
        kernel,
        out_shape=jax.ShapeDtypeStruct((b, t, e), q_arr.dtype),
        grid_spec=pltpu.PrefetchScalarGridSpec(
            num_scalar_prefetch=0, grid=grid,
            in_specs=[
                pl.BlockSpec((1, t_tile, e), lambda bi, ti, si: (bi, ti, qo)),
                pl.BlockSpec((1, s_tile, e), lambda bi, ti, si: (bi, si, ko)),
                pl.BlockSpec((1, s_tile, e), lambda bi, ti, si: (bi, si, vo)),
            ],
            out_specs=pl.BlockSpec((1, t_tile, e), lambda bi, ti, si: (bi, ti, 0)),
            scratch_shapes=[
                pltpu.VMEM((num_heads, t_tile, 1), jnp.float32),   # running max
                pltpu.VMEM((num_heads, t_tile, 1), jnp.float32),   # running sum
                pltpu.VMEM((t_tile, e), jnp.float32),              # output accumulator
            ]),
        compiler_params=pltpu.CompilerParams(
            dimension_semantics=("parallel", "parallel", "arbitrary"),
            vmem_limit_bytes=VMEM_LIMIT_BYTES),
    )(q_arr, k_arr, v_arr)
    return res, None


# ----------------------------- Module wrapper -------------------------------

class MultiHeadAttentionPallas:
    def __init__(self, embed_dim, num_attn_heads, key=None, compute_dtype=jnp.bfloat16):
        self.embed_dim = embed_dim
        self.num_heads = num_attn_heads
        self.head_embed_size = embed_dim // num_attn_heads
        assert self.head_embed_size * num_attn_heads == embed_dim
        self.head_scaling = math.sqrt(self.head_embed_size)
        self.compute_dtype = compute_dtype

        if key is None:
            key = jax.random.PRNGKey(0)
        ks = jax.random.split(key, 4)

        def xavier_uniform(k, shape, gain):
            fan_out, fan_in = shape
            limit = gain * math.sqrt(6.0 / (fan_in + fan_out))
            return jax.random.uniform(k, shape, jnp.float32, -limit, limit)

        g = 1.0 / math.sqrt(2.0)
        e = embed_dim
        # torch-layout (Dout, Din) fp32 weights, kept for the pure-JAX reference
        self.Wk = xavier_uniform(ks[0], (e, e), g)
        self.Wv = xavier_uniform(ks[1], (e, e), g)
        self.Wq = xavier_uniform(ks[2], (e, e), g)
        self.Wo = xavier_uniform(ks[3], (e, e), 1.0)
        self.bk = jnp.linspace(-0.01, 0.01, e, dtype=jnp.float32)
        self.bv = jnp.linspace(-0.02, 0.02, e, dtype=jnp.float32)
        self.bq = jnp.linspace(-0.03, 0.03, e, dtype=jnp.float32)
        self.bo = jnp.zeros((e,), jnp.float32)  # nn.init.constant_(out_proj.bias, 0.0)

        # Kernel weights: pre-transposed ONCE, 1/sqrt(d_k) folded into the Q projection
        # (softmax((q/s) k^T) == softmax((q k^T)/s)), cast to the MXU compute dtype.
        inv_scale = 1.0 / self.head_scaling
        cd = compute_dtype
        wq_t_scaled = self.Wq.T * inv_scale
        self.bq_scaled = self.bq * inv_scale                       # fp32, added in fp32 acc
        self.Wq_t = wq_t_scaled.astype(cd)
        self.Wk_t = self.Wk.T.astype(cd)
        self.Wv_t = self.Wv.T.astype(cd)
        self.Wo_t = self.Wo.T.astype(cd)
        self.Wqkv_t = jnp.concatenate([wq_t_scaled, self.Wk.T, self.Wv.T], axis=1).astype(cd)
        self.bqkv = jnp.concatenate([self.bq_scaled, self.bk, self.bv])   # (3E,) fp32

    def __call__(self, query, key, value, need_weights=True):
        # query/key/value: (T, B, E) / (S, B, E) / (S, B, E)
        t, b, e = query.shape
        s = key.shape[0]
        h = self.num_heads
        cd = self.compute_dtype

        # Batch-major activations (head split/merge happens inside the attention kernel).
        q_in = jnp.transpose(query, (1, 0, 2)).reshape(b * t, e)

        if (query is key) and (key is value):
            # Self-attention: ONE fused QKV GEMM (reads x once, 3x larger N for the MXU).
            qkv = pallas_linear(q_in, self.Wqkv_t, self.bqkv, out_dtype=cd)   # (B*T, 3E)
            if e % 128 == 0:
                # Zero-copy: attention BlockSpecs index q/k/v columns out of the fused slab.
                slab = qkv.reshape(b, t, 3 * e)
                q_a, k_a, v_a = slab, slab, slab
                col_offs = (0, 1, 2)
            else:
                # Toy sizes (E not lane-aligned): cheap contiguous split keeps BlockSpecs legal.
                q_a = qkv[:, :e].reshape(b, t, e)
                k_a = qkv[:, e:2 * e].reshape(b, t, e)
                v_a = qkv[:, 2 * e:].reshape(b, t, e)
                col_offs = (0, 0, 0)
        else:
            # Cross-attention path: separate projections (Q weights already carry the scale).
            k_in = jnp.transpose(key, (1, 0, 2)).reshape(b * s, e)
            v_in = jnp.transpose(value, (1, 0, 2)).reshape(b * s, e)
            q_a = pallas_linear(q_in, self.Wq_t, self.bq_scaled, out_dtype=cd).reshape(b, t, e)
            k_a = pallas_linear(k_in, self.Wk_t, self.bk, out_dtype=cd).reshape(b, s, e)
            v_a = pallas_linear(v_in, self.Wv_t, self.bv, out_dtype=cd).reshape(b, s, e)
            col_offs = (0, 0, 0)

        attn_b, attn_weights = pallas_attention(q_a, k_a, v_a, e, col_offs, h, need_weights)

        # Output projection on the batch-major slab, then back to (T, B, E) in the input dtype.
        out = pallas_linear(attn_b.reshape(b * t, e), self.Wo_t, self.bo,
                            out_dtype=query.dtype).reshape(b, t, e)
        out = jnp.transpose(out, (1, 0, 2))

        return out, (attn_weights if need_weights else None)


# ------------------------------ Reference (pure JAX, fp32) ------------------------

def reference_forward(mha, query, key, value):
    t, b, e = query.shape
    s = key.shape[0]
    h, d = mha.num_heads, mha.head_embed_size
    q = query @ mha.Wq.T + mha.bq
    k = key @ mha.Wk.T + mha.bk
    v = value @ mha.Wv.T + mha.bv
    Q = jnp.transpose(q.reshape(t, b, h, d), (2, 1, 0, 3)).reshape(h * b, t, d)
    K = jnp.transpose(k.reshape(s, b, h, d), (2, 1, 0, 3)).reshape(h * b, s, d)
    V = jnp.transpose(v.reshape(s, b, h, d), (2, 1, 0, 3)).reshape(h * b, s, d)
    scores = jnp.einsum("btd,bsd->bts", Q, K) / mha.head_scaling
    w = jax.nn.softmax(scores, axis=-1)
    a = jnp.einsum("bts,bsd->btd", w, V)
    a = jnp.transpose(a.reshape(h, b, t, d), (2, 1, 0, 3)).reshape(t, b, e)
    out = a @ mha.Wo.T + mha.bo
    return out, w.reshape(h, b, t, s)


# ----------------------------------- Main ------------------------------------

if __name__ == "__main__":
    T, B, E, H = 8, 2, 32, 4
    root = jax.random.PRNGKey(0)
    kx, kp = jax.random.split(root)

    # self-attention: query == key == value, shape (T, B, E)
    x = jax.random.normal(kx, (T, B, E), dtype=jnp.float32)

    # --- Exact-parity check: fp32 MXU operands -------------------------------------------
    mha_f32 = MultiHeadAttentionPallas(E, H, key=kp, compute_dtype=jnp.float32)
    ref_attn, ref_w = reference_forward(mha_f32, x, x, x)

    attn, attn_weights = mha_f32(x, x, x, need_weights=True)
    attn = jax.block_until_ready(attn)
    attn_weights = jax.block_until_ready(attn_weights)
    assert attn.shape == (T, B, E)
    assert attn_weights.shape == (H, B, T, T)
    assert jnp.allclose(attn, ref_attn, atol=1e-4, rtol=1e-4)
    assert jnp.allclose(attn_weights, ref_w, atol=1e-4, rtol=1e-4)

    # Flash (online-softmax, S-tiled) path; exact reciprocal so it matches tightly in fp32.
    attn_nw, w_none = mha_f32(x, x, x, need_weights=False)
    attn_nw = jax.block_until_ready(attn_nw)
    assert w_none is None
    assert attn_nw.shape == (T, B, E)
    assert jnp.allclose(attn_nw, ref_attn, atol=1e-4, rtol=1e-4)

    # --- Production default: bf16 MXU operands with fp32 accumulation ---------------------
    mha_bf16 = MultiHeadAttentionPallas(E, H, key=kp, compute_dtype=jnp.bfloat16)
    attn_b, w_b = mha_bf16(x, x, x, need_weights=True)
    attn_b = jax.block_until_ready(attn_b)
    w_b = jax.block_until_ready(w_b)
    assert jnp.allclose(attn_b, ref_attn, atol=5e-2, rtol=5e-2)
    assert jnp.allclose(w_b, ref_w, atol=5e-2, rtol=5e-2)

    attn_b_nw, w_b_none = mha_bf16(x, x, x, need_weights=False)
    attn_b_nw = jax.block_until_ready(attn_b_nw)
    assert w_b_none is None
    assert jnp.allclose(attn_b_nw, ref_attn, atol=5e-2, rtol=5e-2)

    print("KERNEL_OK")
</pallas_src>

<mosaic_0001>
module attributes {stable_mosaic.version = 11 : i64} {
  func.func @_linear_kernel(%arg0: i32, %arg1: i32, %arg2: i32, %arg3: memref<16x32xf32, #tpu.memory_space<vmem>>, %arg4: memref<32x96xf32, #tpu.memory_space<vmem>>, %arg5: memref<1x96xf32, #tpu.memory_space<vmem>>, %arg6: memref<16x96xf32, #tpu.memory_space<vmem>>, %arg7: memref<16x96xf32, #tpu.memory_space<vmem>>) attributes {dimension_semantics = [#tpu.dimension_semantics<parallel>, #tpu.dimension_semantics<parallel>, #tpu.dimension_semantics<arbitrary>], iteration_bounds = array<i64: 1, 1, 1>, scalar_prefetch = 0 : i64, scratch_operands = 1 : i64, tpu.core_type = #tpu.core_type<tc>, window_params = [{transform_indices = @transform_0, window_bounds = array<i64: 16, 32>}, {transform_indices = @transform_1, window_bounds = array<i64: 32, 96>}, {transform_indices = @transform_2, window_bounds = array<i64: 1, 96>}, {transform_indices = @transform_3, window_bounds = array<i64: 16, 96>}]} {
    %c0_i32 = arith.constant 0 : i32
    %0 = arith.cmpi eq, %arg2, %c0_i32 : i32
    %1 = arith.extui %0 : i1 to i32
    %c0_i32_0 = arith.constant 0 : i32
    %2 = arith.cmpi ne, %1, %c0_i32_0 : i32
    scf.if %2 {
      %cst_10 = arith.constant 0.000000e+00 : f32
      %12 = vector.broadcast %cst_10 : f32 to vector<16x96xf32>
      %c0_11 = arith.constant 0 : index
      %c0_12 = arith.constant 0 : index
      %13 = vector.load %arg7[%c0_11, %c0_12] : memref<16x96xf32, #tpu.memory_space<vmem>>, vector<16x96xf32>
      tpu.vector_store %arg7[%c0_11, %c0_12], %12 {strides = array<i32>} : memref<16x96xf32, #tpu.memory_space<vmem>>, vector<16x96xf32>,
    } else {
    }
    %c0 = arith.constant 0 : index
    %c0_1 = arith.constant 0 : index
    %3 = vector.load %arg7[%c0, %c0_1] : memref<16x96xf32, #tpu.memory_space<vmem>>, vector<16x96xf32>
    %c0_2 = arith.constant 0 : index
    %c0_3 = arith.constant 0 : index
    %4 = vector.load %arg3[%c0_2, %c0_3] : memref<16x32xf32, #tpu.memory_space<vmem>>, vector<16x32xf32>
    %c0_4 = arith.constant 0 : index
    %c0_5 = arith.constant 0 : index
    %5 = vector.load %arg4[%c0_4, %c0_5] : memref<32x96xf32, #tpu.memory_space<vmem>>, vector<32x96xf32>
    %cst = arith.constant dense<0.000000e+00> : vector<16x96xf32>
    %6 = tpu.matmul %4, %5, %cst {dimension_numbers = #tpu.dot_dimension_numbers<[1], [0], [0], [1], [0, 0, 1, 1], [], []>} : vector<16x32xf32>, vector<32x96xf32>, vector<16x96xf32> -> vector<16x96xf32>
    %7 = arith.addf %3, %6 : vector<16x96xf32>
    %c0_6 = arith.constant 0 : index
    %c0_7 = arith.constant 0 : index
    %8 = vector.load %arg7[%c0_6, %c0_7] : memref<16x96xf32, #tpu.memory_space<vmem>>, vector<16x96xf32>
    tpu.vector_store %arg7[%c0_6, %c0_7], %7 {strides = array<i32>} : memref<16x96xf32, #tpu.memory_space<vmem>>, vector<16x96xf32>,
    %c0_i32_8 = arith.constant 0 : i32
    %9 = arith.cmpi eq, %arg2, %c0_i32_8 : i32
    %10 = arith.extui %9 : i1 to i32
    %c0_i32_9 = arith.constant 0 : i32
    %11 = arith.cmpi ne, %10, %c0_i32_9 : i32
    scf.if %11 {
      %c0_10 = arith.constant 0 : index
      %c0_11 = arith.constant 0 : index
      %12 = vector.load %arg7[%c0_10, %c0_11] : memref<16x96xf32, #tpu.memory_space<vmem>>, vector<16x96xf32>
      %c0_12 = arith.constant 0 : index
      %c0_13 = arith.constant 0 : index
      %13 = vector.load %arg5[%c0_12, %c0_13] : memref<1x96xf32, #tpu.memory_space<vmem>>, vector<1x96xf32>
      %14 = vector.broadcast %13 : vector<1x96xf32> to vector<16x96xf32>
      %15 = arith.addf %12, %14 : vector<16x96xf32>
      %c0_14 = arith.constant 0 : index
      %c0_15 = arith.constant 0 : index
      %16 = vector.load %arg6[%c0_14, %c0_15] : memref<16x96xf32, #tpu.memory_space<vmem>>, vector<16x96xf32>
      tpu.vector_store %arg6[%c0_14, %c0_15], %15 {strides = array<i32>} : memref<16x96xf32, #tpu.memory_space<vmem>>, vector<16x96xf32>,
    } else {
    }
    return
  }
  func.func @transform_0(%arg0: i32, %arg1: i32, %arg2: i32) -> (i32, i32) {
    %c0_i32 = arith.constant 0 : i32
    return %arg0, %arg2 : i32, i32
  }
  func.func @transform_1(%arg0: i32, %arg1: i32, %arg2: i32) -> (i32, i32) {
    %c0_i32 = arith.constant 0 : i32
    return %arg2, %arg1 : i32, i32
  }
  func.func @transform_2(%arg0: i32, %arg1: i32, %arg2: i32) -> (i32, i32) {
    %c0_i32 = arith.constant 0 : i32
    %c0_i32_0 = arith.constant 0 : i32
    return %c0_i32, %arg1 : i32, i32
  }
  func.func @transform_3(%arg0: i32, %arg1: i32, %arg2: i32) -> (i32, i32) {
    %c0_i32 = arith.constant 0 : i32
    return %arg0, %arg1 : i32, i32
  }
}

</mosaic_0001>

<llo_original>
// kernel: tpu_custom_call.1
$region0: #{tpu_custom_call.1}
  #allocation0 [shape = 'u32[]', space=smem, size = 0x4, offset = 0x4, fixed_abs, tag = 'smem constant byte address 0x4 - core index']
  #allocation1 [shape = 'u32[144,128]{1,0:T(1,128)}', space=vmem, size = 0x12000, scoped, tag = 'internal scratch']
  #allocation2 [shape = 'f32[16,96]{1,0:T(8,128)}', space=vmem, size = 0x2000, scoped, tag = 'scratch operand']
  %s0 = inlined_call_operand.hbm [shape: f32[16,32], index: 0, kind: input, shape index: {}]
  %s1 = inlined_call_operand.hbm [shape: f32[32,96], index: 1, kind: input, shape index: {}]
  %s2 = inlined_call_operand.vmem [shape: f32[1,96], index: 2, kind: input, shape index: {}]
  %s3 = inlined_call_operand.hbm [shape: f32[16,96], index: 3, kind: output, shape index: {}]
  %s4 = sld [smem:[#allocation0]]
  $region38: #{tpu_custom_call.1} parent=0
    _
  %s6 = ssub.s32 1, %s4
  %s7 = scalar_select 0, %s6, %s4
  $region1: #{tpu_custom_call.1} parent=0
    #allocation3 [shape = 'u8[8192]{0}', space=vmem, size = 0x2000, scoped, tag = 'input window, operand 0, single buffered']
    #allocation4 [shape = 's32[1]{0}', space=sflag, size = 0x4, scoped, tag = 'scoped memory for tpu_custom_call.1']
    #allocation5 [shape = 's32[1]{0}', space=sflag, size = 0x4, scoped, tag = 'scoped memory for tpu_custom_call.1']
    #allocation6 [shape = 'u8[16384]{0}', space=vmem, size = 0x4000, scoped, tag = 'input window, operand 1, single buffered']
    #allocation7 [shape = 's32[1]{0}', space=sflag, size = 0x4, scoped, tag = 'scoped memory for tpu_custom_call.1']
    #allocation8 [shape = 'u8[8192]{0}', space=vmem, size = 0x2000, scoped, tag = 'output window, operand 0, single buffered']
    %8 = vsyncpa [#allocation4], 0
    %9 = vsyncpa [#allocation7], 0
    %10 = vsyncpa [#allocation5], 0
    // Predicated region
    $region2: #{tpu_custom_call.1} parent=1 // pred_check
      _
    $region3: #{tpu_custom_call.1} parent=1 // pred_check_branch
      %12 = sbr.rel (0) target = $region5
    $region4: #{tpu_custom_call.1} parent=1 // pred_region
      %s14 = ssub.s32 256, 256
      %15 = vsyncadd [#allocation4], %s14
      %s16 = sshll.u32 [#allocation3], 4
      %s17 = int_to_ptr.vmem [resolvable:$true] %s16
      %22 = dma.hbm_to_vmem [thread:$0]  %s0, 256, %s17, [#allocation4], 128, 128, 8
    $region5: #{tpu_custom_call.1} parent=1 // pred_fallthru
      _
    // Predicated region
    $region6: #{tpu_custom_call.1} parent=1 // pred_check
      _
    $region7: #{tpu_custom_call.1} parent=1 // pred_check_branch
      %24 = sbr.rel (0) target = $region9
    $region8: #{tpu_custom_call.1} parent=1 // pred_region
      %s26 = ssub.s32 512, 512
      %27 = vsyncadd [#allocation7], %s26
      %s28 = sshll.u32 [#allocation6], 4
      %s29 = int_to_ptr.vmem [resolvable:$true] %s28
      %34 = dma.hbm_to_vmem [thread:$0]  %s1, 512, %s29, [#allocation7], 128, 128, 8
    $region9: #{tpu_custom_call.1} parent=1 // pred_fallthru
      _
    // Predicated region
    $region10: #{tpu_custom_call.1} parent=1 // pred_check
      _
    $region11: #{tpu_custom_call.1} parent=1 // pred_check_branch
      %36 = sbr.rel (0) target = $region13
    $region12: #{tpu_custom_call.1} parent=1 // pred_region
      _
    $region13: #{tpu_custom_call.1} parent=1 // pred_fallthru
      _
    // Predicated region
    $region14: #{tpu_custom_call.1} parent=1 // pred_check
      _
    $region15: #{tpu_custom_call.1} parent=1 // pred_check_branch
      %38 = sbr.rel (0) target = $region17
    $region16: #{tpu_custom_call.1} parent=1 // pred_region
      %39 = dma.done [#allocation4], 256
    $region17: #{tpu_custom_call.1} parent=1 // pred_fallthru
      _
    // Predicated region
    $region18: #{tpu_custom_call.1} parent=1 // pred_check
      _
    $region19: #{tpu_custom_call.1} parent=1 // pred_check_branch
      %41 = sbr.rel (0) target = $region21
    $region20: #{tpu_custom_call.1} parent=1 // pred_region
      %42 = dma.done [#allocation7], 512
    $region21: #{tpu_custom_call.1} parent=1 // pred_fallthru
      _
    %p43 = scmp.eq.s32.totalorder 0, 0
    // Predicated region
    $region22: #{tpu_custom_call.1} parent=1 // pred_check
      %p44 = pneg %p43
    $region23: #{tpu_custom_call.1} parent=1 // pred_check_branch
      %46 = sbr.rel (%p44) target = $region25
    $region24: #{tpu_custom_call.1} parent=1 // pred_region
      %vm47 = vcmask 785408
      %48 = vst.msk [vmem:[#allocation2] sm:$0xff] %vm47, 0.0
      %49 = vst.msk [vmem:[#allocation2 + $0x8] sm:$0xff] %vm47, 0.0
    $region25: #{tpu_custom_call.1} parent=1 // pred_fallthru
      _
    %v50 = vld [vmem:[#allocation2] sm:$0xff]
    %v51 = vld [vmem:[#allocation2 + $0x8] sm:$0xff]
    %v52 = vld [vmem:[#allocation3] sm:$0xff]
    %v53 = vld [vmem:[#allocation3 + $0x8] sm:$0xff]
    %v54 = vld [vmem:[#allocation6] sm:$0xff]
    %v55 = vld [vmem:[#allocation6 + $0x8] sm:$0xff]
    %v56 = vld [vmem:[#allocation6 + $0x10] sm:$0xff]
    %v57 = vld [vmem:[#allocation6 + $0x18] sm:$0xff]
    %vm58 = vcmask 261120
    %v60 = vsel %vm58, %v52, 0
    %v63 = vsel %vm58, %v53, 0
    %65 = vmatprep.subr.mxu0 0.0
    %66 = vmatpush1.msra.mxu0 %v54
    %67 = vmatprep.subr.mxu0 0.0
    %68 = vmatpush1.msra.mxu0 %v55
    %69 = vmatprep.subr.mxu0 0.0
    %70 = vmatpush1.msra.mxu0 %v56
    %71 = vmatprep.subr.mxu0 0.0
    %72 = vmatpush1.msra.mxu0 %v57
    %73 = vmatprep.subr.mxu0 0.0
    %74 = vmatpush1.msra.mxu0 0.0
    %75 = vmatprep.subr.mxu0 0.0
    %76 = vmatpush1.msra.mxu0 0.0
    %77 = vmatprep.subr.mxu0 0.0
    %78 = vmatpush1.msra.mxu0 0.0
    %79 = vmatprep.subr.mxu0 0.0
    %80 = vmatpush1.msra.mxu0 0.0
    %81 = vmatprep.subr.mxu0 0.0
    %82 = vmatpush1.msra.mxu0 0.0
    %83 = vmatprep.subr.mxu0 0.0
    %84 = vmatpush1.msra.mxu0 0.0
    %85 = vmatprep.subr.mxu0 0.0
    %86 = vmatpush1.msra.mxu0 0.0
    %87 = vmatprep.subr.mxu0 0.0
    %88 = vmatpush1.msra.mxu0 0.0
    %89 = vmatprep.subr.mxu0 0.0
    %90 = vmatpush1.msra.mxu0 0.0
    %91 = vmatprep.subr.mxu0 0.0
    %92 = vmatpush1.msra.mxu0 0.0
    %93 = vmatprep.subr.mxu0 0.0
    %94 = vmatpush1.msra.mxu0 0.0
    %95 = vmatprep.subr.mxu0 0.0
    %96 = vmatpush1.msra.mxu0 0.0
    %97 = vmatprep.subr.mxu0 0.0
    %98 = vmatpush1.msra.mxu0 0.0
    %99 = vmatprep.subr.mxu0 0.0
    %100 = vmatpush1.msra.mxu0 0.0
    %101 = vmatprep.subr.mxu0 0.0
    %102 = vmatpush1.msra.mxu0 0.0
    %103 = vmatprep.subr.mxu0 0.0
    %104 = vmatpush1.msra.mxu0 0.0
    %105 = vmatprep.subr.mxu0 0.0
    %106 = vmatpush1.msra.mxu0 0.0
    %107 = vmatprep.subr.mxu0 0.0
    %108 = vmatpush1.msra.mxu0 0.0
    %109 = vmatprep.subr.mxu0 0.0
    %110 = vmatpush1.msra.mxu0 0.0
    %111 = vmatprep.subr.mxu0 0.0
    %112 = vmatpush1.msra.mxu0 0.0
    %113 = vmatprep.subr.mxu0 0.0
    %114 = vmatpush1.msra.mxu0 0.0
    %115 = vmatprep.subr.mxu0 0.0
    %116 = vmatpush1.msra.mxu0 0.0
    %117 = vmatprep.subr.mxu0 0.0
    %118 = vmatpush1.msra.mxu0 0.0
    %119 = vmatprep.subr.mxu0 0.0
    %120 = vmatpush1.msra.mxu0 0.0
    %121 = vmatprep.subr.mxu0 0.0
    %122 = vmatpush1.msra.mxu0 0.0
    %123 = vmatprep.subr.mxu0 0.0
    %124 = vmatpush1.msra.mxu0 0.0
    %125 = vmatprep.subr.mxu0 0.0
    %126 = vmatpush1.msra.mxu0 0.0
    %127 = vmatprep.subr.mxu0 0.0
    %128 = vmatpush1.msra.mxu0 0.0
    %129 = vmatprep.mubr.f32.mxu0 0.0
    %130 = vmatmul.mubr.f32.gmra.mrb[0].mxu0 %v60
    %v131 = vpop.f32.mrb[0].mxu0
    %v132 = vadd.f32 0.0, %v131
    %v133 = vpop.f32.mrb[0].mxu0
    %134 = vmatprep.mubr.f32.mxu0 0.0
    %135 = vmatmul.mubr.f32.gmra.mrb[0].mxu0 %v63
    %v136 = vpop.f32.mrb[0].mxu0
    %v137 = vadd.f32 0.0, %v136
    %v138 = vpop.f32.mrb[0].mxu0
    %139 = vdwg.mxu0
    %v140 = vadd.f32 %v50, %v132
    %v141 = vadd.f32 %v51, %v137
    %vm142 = vcmask 785408
    %143 = vst.msk [vmem:[#allocation2] sm:$0xff] %vm142, %v140
    %144 = vst.msk [vmem:[#allocation2 + $0x8] sm:$0xff] %vm142, %v141
    // Predicated region
    $region26: #{tpu_custom_call.1} parent=1 // pred_check
      %p145 = pneg %p43
    $region27: #{tpu_custom_call.1} parent=1 // pred_check_branch
      %147 = sbr.rel (%p145) target = $region29
    $region28: #{tpu_custom_call.1} parent=1 // pred_region
      %v148 = vld [vmem:[#allocation2] sm:$0xff]
      %v149 = vld [vmem:[#allocation2 + $0x8] sm:$0xff]
      %v150 = vld [vmem:[%s2] sm:$0x1]
      %v152 = vlaneseq
      %v153 = vshrl.u32 %v152, 7
      %v154 = vsub.s32 0, %v153
      %v155 = vrot.slane %v150, %v154
      %v157 = vadd.f32 %v148, %v155
      %v158 = vadd.f32 %v149, %v155
      %159 = vst.msk [vmem:[#allocation8] sm:$0xff] %vm142, %v157
      %160 = vst.msk [vmem:[#allocation8 + $0x8] sm:$0xff] %vm142, %v158
    $region29: #{tpu_custom_call.1} parent=1 // pred_fallthru
      _
    // Predicated region
    $region30: #{tpu_custom_call.1} parent=1 // pred_check
      _
    $region31: #{tpu_custom_call.1} parent=1 // pred_check_branch
      %162 = sbr.rel (0) target = $region33
    $region32: #{tpu_custom_call.1} parent=1 // pred_region
      %s164 = ssub.s32 256, 256
      %165 = vsyncadd [#allocation5], %s164
      %s166 = sshll.u32 [#allocation8], 4
      %s167 = int_to_ptr.vmem [resolvable:$true] %s166
      %172 = dma.vmem_to_hbm [thread:$0]  %s167, 256, %s3, [#allocation5], 128, 128, 8
    $region33: #{tpu_custom_call.1} parent=1 // pred_fallthru
      _
    // Predicated region
    $region34: #{tpu_custom_call.1} parent=1 // pred_check
      _
    $region35: #{tpu_custom_call.1} parent=1 // pred_check_branch
      %174 = sbr.rel (0) target = $region37
    $region36: #{tpu_custom_call.1} parent=1 // pred_region
      %175 = dma.done [#allocation5], 256
    $region37: #{tpu_custom_call.1} parent=1 // pred_fallthru
      _
    %176 = vsyncpa [#allocation4], 1
    %177 = vsyncpa [#allocation7], 1
    %178 = vsyncpa [#allocation5], 1

</llo_original>
